<compile_context>
chip_gen: v6e
topology: v6e:2x2x1
jax: 0.10.0
libtpu: 0.0.40
codegen_flags: <defaults>
</compile_context>

<pallas_src>
import jax
import jax.numpy as jnp
from jax import lax
from jax.experimental import pallas as pl
from jax.experimental.pallas import tpu as pltpu


def _round_up(x: int, m: int) -> int:
    return (x + m - 1) // m * m


def skipgram_kernel(c_ref, k_ref, out_ref):
    # c_ref  : VMEM (tm, E_pad) bf16 -- gathered center rows (reused over j)
    # k_ref  : VMEM (tn, E_pad) bf16 -- gathered context rows (double-buffered)
    # out_ref: VMEM (tm, tn)         -- output tile
    logits = lax.dot_general(
        c_ref[...], k_ref[...],
        dimension_numbers=(((1,), (1,)), ((), ())),   # contract last dims
        preferred_element_type=jnp.float32,           # bf16 MXU, f32 acc
    )
    # Numerically stable logsigmoid in f32 (portable to v5e's f32-only EUP).
    out_ref[...] = (
        jnp.minimum(logits, 0.0) - jnp.log1p(jnp.exp(-jnp.abs(logits)))
    ).astype(out_ref.dtype)


def skipgram_forward(embeddings, center_id, context_id, *,
                     tm_max=512, tn_max=512, out_dtype=jnp.float32):
    """logsigmoid(E[center] @ E[context].T) with a tiled Pallas TPU kernel."""
    V, E = embeddings.shape
    N = int(center_id.shape[0])
    M = int(context_id.shape[0])

    E_pad = _round_up(E, 128)                 # lane-dense contraction dim
    tm = min(tm_max, _round_up(N, 8))         # output sublane tile
    tn = min(tn_max, _round_up(M, 128))       # output lane tile (mult. of 128)
    N_pad = _round_up(N, tm)
    M_pad = _round_up(M, tn)
    grid = (N_pad // tm, M_pad // tn)

    # Pre-gather embedding rows in bf16 (one coalesced gather; no per-row DMA
    # descriptors in the kernel).  Zero padding contributes nothing to the dot
    # and padded output rows/cols are sliced away below.
    emb_bf16 = embeddings.astype(jnp.bfloat16)
    c_rows = jnp.take(emb_bf16, center_id.astype(jnp.int32), axis=0)    # (N, E)
    k_rows = jnp.take(emb_bf16, context_id.astype(jnp.int32), axis=0)   # (M, E)
    c_rows = jnp.pad(c_rows, ((0, N_pad - N), (0, E_pad - E)))
    k_rows = jnp.pad(k_rows, ((0, M_pad - M), (0, E_pad - E)))

    grid_spec = pltpu.PrefetchScalarGridSpec(
        num_scalar_prefetch=0,
        grid=grid,
        in_specs=[
            # Center block depends only on i -> fetched once per i-tile,
            # reused (not re-DMA'd) across the whole j sweep.
            pl.BlockSpec((tm, E_pad), lambda i, j: (i, 0)),
            # Context block depends only on j -> auto double-buffered and
            # prefetched while the current tile computes.
            pl.BlockSpec((tn, E_pad), lambda i, j: (j, 0)),
        ],
        out_specs=pl.BlockSpec((tm, tn), lambda i, j: (i, j)),
    )

    out_bytes = jnp.dtype(out_dtype).itemsize
    cost = pl.CostEstimate(
        flops=2 * N_pad * M_pad * E_pad,
        transcendentals=2 * N_pad * M_pad,
        bytes_accessed=(N_pad * E_pad + grid[0] * M_pad * E_pad) * 2
        + N_pad * M_pad * out_bytes,
    )

    out_padded = pl.pallas_call(
        skipgram_kernel,
        out_shape=jax.ShapeDtypeStruct((N_pad, M_pad), out_dtype),
        grid_spec=grid_spec,
        compiler_params=pltpu.CompilerParams(
            # No carried state between tiles -> both axes are independent;
            # lets v7x's 2 TensorCores shard on either axis.
            dimension_semantics=("parallel", "parallel"),
            # Explicit budget: ~3 MiB needed at tm=tn=512; 32 MiB is safe on
            # every generation (incl. v7x's 64 MiB physical VMEM).
            vmem_limit_bytes=32 * 1024 * 1024,
        ),
        cost_estimate=cost,
    )(c_rows, k_rows)

    return out_padded[:N, :M]


def reference_forward(embeddings, center_id, context_id):
    # Mirror the kernel's bf16 MXU operands (bf16 round-trip) so the
    # comparison tolerance can stay tight.  Not bit-accurate to an f32
    # PyTorch matmul by design.
    c = jnp.take(embeddings, center_id, axis=0).astype(jnp.bfloat16).astype(jnp.float32)
    k = jnp.take(embeddings, context_id, axis=0).astype(jnp.bfloat16).astype(jnp.float32)
    return jax.nn.log_sigmoid(c @ k.T)


if __name__ == "__main__":
    # Deterministic synthetic parameters (module: Embedding(len(tok2idx), E)).
    VOCAB_SIZE = 50        # stands in for len(TOK2IDX)
    EMBEDDING_SIZE = 32    # small stand-in for 100 (padded to 128 internally)
    N_TOKENS = 8           # batch of (center, context) pairs

    key = jax.random.PRNGKey(0)
    k_emb, k_center, k_context = jax.random.split(key, 3)

    embeddings = jax.random.normal(
        k_emb, (VOCAB_SIZE, EMBEDDING_SIZE), dtype=jnp.float32
    )
    center_id = jax.random.randint(k_center, (N_TOKENS,), 0, VOCAB_SIZE)
    context_id = jax.random.randint(k_context, (N_TOKENS,), 0, VOCAB_SIZE)

    out = skipgram_forward(embeddings, center_id, context_id)
    out = jax.block_until_ready(out)

    ref = reference_forward(embeddings, center_id, context_id)
    assert out.shape == (N_TOKENS, N_TOKENS)
    assert jnp.allclose(out, ref, atol=1e-4, rtol=1e-4), float(
        jnp.max(jnp.abs(out - ref))
    )

    print("KERNEL_OK")
</pallas_src>

<mosaic_0001>
module attributes {stable_mosaic.version = 11 : i64} {
  func.func @skipgram_kernel(%arg0: i32, %arg1: i32, %arg2: memref<8x128xbf16, #tpu.memory_space<vmem>>, %arg3: memref<128x128xbf16, #tpu.memory_space<vmem>>, %arg4: memref<8x128xf32, #tpu.memory_space<vmem>>) attributes {dimension_semantics = [#tpu.dimension_semantics<parallel>, #tpu.dimension_semantics<parallel>], iteration_bounds = array<i64: 1, 1>, scalar_prefetch = 0 : i64, scratch_operands = 0 : i64, tpu.core_type = #tpu.core_type<tc>, window_params = [{transform_indices = @transform_0, window_bounds = array<i64: 8, 128>}, {transform_indices = @transform_1, window_bounds = array<i64: 128, 128>}, {transform_indices = @transform_2, window_bounds = array<i64: 8, 128>}]} {
    %c0 = arith.constant 0 : index
    %c0_0 = arith.constant 0 : index
    %0 = vector.load %arg2[%c0, %c0_0] : memref<8x128xbf16, #tpu.memory_space<vmem>>, vector<8x128xbf16>
    %c0_1 = arith.constant 0 : index
    %c0_2 = arith.constant 0 : index
    %1 = vector.load %arg3[%c0_1, %c0_2] : memref<128x128xbf16, #tpu.memory_space<vmem>>, vector<128x128xbf16>
    %cst = arith.constant dense<0.000000e+00> : vector<8x128xf32>
    %2 = tpu.matmul %0, %1, %cst {dimension_numbers = #tpu.dot_dimension_numbers<[1], [1], [0], [0], [0, 0, 1, 0], [], []>} : vector<8x128xbf16>, vector<128x128xbf16>, vector<8x128xf32> -> vector<8x128xf32>
    %cst_3 = arith.constant 0.000000e+00 : f32
    %3 = vector.broadcast %cst_3 : f32 to vector<8x128xf32>
    %4 = arith.minimumf %2, %3 : vector<8x128xf32>
    %5 = math.absf %2 : vector<8x128xf32>
    %cst_4 = arith.constant 0.000000e+00 : f32
    %6 = vector.broadcast %cst_4 : f32 to vector<8x128xf32>
    %7 = arith.subf %6, %5 : vector<8x128xf32>
    %8 = math.exp %7 : vector<8x128xf32>
    %9 = math.log1p %8 : vector<8x128xf32>
    %10 = arith.subf %4, %9 : vector<8x128xf32>
    %c0_5 = arith.constant 0 : index
    %c0_6 = arith.constant 0 : index
    %11 = vector.load %arg4[%c0_5, %c0_6] : memref<8x128xf32, #tpu.memory_space<vmem>>, vector<8x128xf32>
    tpu.vector_store %arg4[%c0_5, %c0_6], %10 {strides = array<i32>} : memref<8x128xf32, #tpu.memory_space<vmem>>, vector<8x128xf32>,
    return
  }
  func.func @transform_0(%arg0: i32, %arg1: i32) -> (i32, i32) {
    %c0_i32 = arith.constant 0 : i32
    %c0_i32_0 = arith.constant 0 : i32
    return %arg0, %c0_i32 : i32, i32
  }
  func.func @transform_1(%arg0: i32, %arg1: i32) -> (i32, i32) {
    %c0_i32 = arith.constant 0 : i32
    %c0_i32_0 = arith.constant 0 : i32
    return %arg1, %c0_i32 : i32, i32
  }
  func.func @transform_2(%arg0: i32, %arg1: i32) -> (i32, i32) {
    %c0_i32 = arith.constant 0 : i32
    return %arg0, %arg1 : i32, i32
  }
}

</mosaic_0001>

<llo_original>
// kernel: tpu_custom_call.1
$region0: #{tpu_custom_call.1}
  #allocation0 [shape = 'u32[]', space=smem, size = 0x4, offset = 0x4, fixed_abs, tag = 'smem constant byte address 0x4 - core index']
  #allocation1 [shape = 'u32[144,128]{1,0:T(1,128)}', space=vmem, size = 0x12000, scoped, tag = 'internal scratch']
  %s0 = inlined_call_operand.hbm [shape: bf16[8,128], index: 0, kind: input, shape index: {}]
  %s1 = inlined_call_operand.hbm [shape: bf16[128,128], index: 1, kind: input, shape index: {}]
  %s2 = inlined_call_operand.hbm [shape: f32[8,128], index: 2, kind: output, shape index: {}]
  %s3 = sld [smem:[#allocation0]]
  $region26: #{tpu_custom_call.1} parent=0
    _
  %s5 = ssub.s32 1, %s3
  %s6 = scalar_select 0, %s5, %s3
  $region1: #{tpu_custom_call.1} parent=0
    #allocation2 [shape = 'u8[2048]{0}', space=vmem, size = 0x800, scoped, tag = 'input window, operand 0, single buffered']
    #allocation3 [shape = 's32[1]{0}', space=sflag, size = 0x4, scoped, tag = 'scoped memory for tpu_custom_call.1']
    #allocation4 [shape = 's32[1]{0}', space=sflag, size = 0x4, scoped, tag = 'scoped memory for tpu_custom_call.1']
    #allocation5 [shape = 'u8[32768]{0}', space=vmem, size = 0x8000, scoped, tag = 'input window, operand 1, single buffered']
    #allocation6 [shape = 's32[1]{0}', space=sflag, size = 0x4, scoped, tag = 'scoped memory for tpu_custom_call.1']
    #allocation7 [shape = 'u8[4096]{0}', space=vmem, size = 0x1000, scoped, tag = 'output window, operand 0, single buffered']
    %7 = vsyncpa [#allocation3], 0
    %8 = vsyncpa [#allocation6], 0
    %9 = vsyncpa [#allocation4], 0
    // Predicated region
    $region2: #{tpu_custom_call.1} parent=1 // pred_check
      _
    $region3: #{tpu_custom_call.1} parent=1 // pred_check_branch
      %11 = sbr.rel (0) target = $region5
    $region4: #{tpu_custom_call.1} parent=1 // pred_region
      %s13 = ssub.s32 64, 64
      %14 = vsyncadd [#allocation3], %s13
      %s16 = sshll.u32 [#allocation2], 4
      %s17 = int_to_ptr.vmem [resolvable:$true] %s16
      %19 = dma.hbm_to_vmem [thread:$0]  %s0, 64, %s17, [#allocation3]
    $region5: #{tpu_custom_call.1} parent=1 // pred_fallthru
      _
    // Predicated region
    $region6: #{tpu_custom_call.1} parent=1 // pred_check
      _
    $region7: #{tpu_custom_call.1} parent=1 // pred_check_branch
      %21 = sbr.rel (0) target = $region9
    $region8: #{tpu_custom_call.1} parent=1 // pred_region
      %s23 = ssub.s32 1024, 1024
      %24 = vsyncadd [#allocation6], %s23
      %s25 = sshll.u32 [#allocation5], 4
      %s26 = int_to_ptr.vmem [resolvable:$true] %s25
      %31 = dma.hbm_to_vmem [thread:$0]  %s1, 1024, %s26, [#allocation6], 64, 64, 4
    $region9: #{tpu_custom_call.1} parent=1 // pred_fallthru
      _
    // Predicated region
    $region10: #{tpu_custom_call.1} parent=1 // pred_check
      _
    $region11: #{tpu_custom_call.1} parent=1 // pred_check_branch
      %33 = sbr.rel (0) target = $region13
    $region12: #{tpu_custom_call.1} parent=1 // pred_region
      %34 = dma.done [#allocation3], 64
    $region13: #{tpu_custom_call.1} parent=1 // pred_fallthru
      _
    // Predicated region
    $region14: #{tpu_custom_call.1} parent=1 // pred_check
      _
    $region15: #{tpu_custom_call.1} parent=1 // pred_check_branch
      %36 = sbr.rel (0) target = $region17
    $region16: #{tpu_custom_call.1} parent=1 // pred_region
      %37 = dma.done [#allocation6], 1024
    $region17: #{tpu_custom_call.1} parent=1 // pred_fallthru
      _
    %v39 = vld [vmem:[#allocation2] sm:$0xf]
    %v40 = vld [vmem:[#allocation5] sm:$0xf]
    %v41 = vld [vmem:[#allocation5 + $0x4] sm:$0xf]
    %v42 = vld [vmem:[#allocation5 + $0x8] sm:$0xf]
    %v43 = vld [vmem:[#allocation5 + $0xc] sm:$0xf]
    %v44 = vld [vmem:[#allocation5 + $0x10] sm:$0xf]
    %v45 = vld [vmem:[#allocation5 + $0x14] sm:$0xf]
    %v46 = vld [vmem:[#allocation5 + $0x18] sm:$0xf]
    %v47 = vld [vmem:[#allocation5 + $0x1c] sm:$0xf]
    %v48 = vld [vmem:[#allocation5 + $0x20] sm:$0xf]
    %v49 = vld [vmem:[#allocation5 + $0x24] sm:$0xf]
    %v50 = vld [vmem:[#allocation5 + $0x28] sm:$0xf]
    %v51 = vld [vmem:[#allocation5 + $0x2c] sm:$0xf]
    %v52 = vld [vmem:[#allocation5 + $0x30] sm:$0xf]
    %v53 = vld [vmem:[#allocation5 + $0x34] sm:$0xf]
    %v54 = vld [vmem:[#allocation5 + $0x38] sm:$0xf]
    %v55 = vld [vmem:[#allocation5 + $0x3c] sm:$0xf]
    %v72 = vunpack.c.l.b16 %v40
    %v73 = vunpack.c.l.b16 %v41
    %v74 = vunpack.c.l.b16 %v42
    %v75 = vunpack.c.l.b16 %v43
    %v76 = vunpack.c.l.b16 %v44
    %v77 = vunpack.c.l.b16 %v45
    %v78 = vunpack.c.l.b16 %v46
    %v79 = vunpack.c.l.b16 %v47
    %v80 = vunpack.c.l.b16 %v48
    %v81 = vunpack.c.l.b16 %v49
    %v82 = vunpack.c.l.b16 %v50
    %v83 = vunpack.c.l.b16 %v51
    %v84 = vunpack.c.l.b16 %v52
    %v85 = vunpack.c.l.b16 %v53
    %v86 = vunpack.c.l.b16 %v54
    %v87 = vunpack.c.l.b16 %v55
    %v88 = vpack.c.b16 %v73, %v72
    %v89 = vpack.c.b16 %v75, %v74
    %v90 = vpack.c.b16 %v77, %v76
    %v91 = vpack.c.b16 %v79, %v78
    %v92 = vpack.c.b16 %v81, %v80
    %v93 = vpack.c.b16 %v83, %v82
    %v94 = vpack.c.b16 %v85, %v84
    %v95 = vpack.c.b16 %v87, %v86
    %104 = vmatprep.subr.bf16.mxu0 0
    %105 = vmatpush1.bf16.xpose.msra.mxu0 %v95
    %106 = vmatprep.subr.bf16.mxu0 0
    %107 = vmatpush1.bf16.xpose.msra.mxu0 %v94
    %108 = vmatprep.subr.bf16.mxu0 0
    %109 = vmatpush1.bf16.xpose.msra.mxu0 %v93
    %110 = vmatprep.subr.bf16.mxu0 0
    %111 = vmatpush1.bf16.xpose.msra.mxu0 %v92
    %112 = vmatprep.subr.bf16.mxu0 0
    %113 = vmatpush1.bf16.xpose.msra.mxu0 %v91
    %114 = vmatprep.subr.bf16.mxu0 0
    %115 = vmatpush1.bf16.xpose.msra.mxu0 %v90
    %116 = vmatprep.subr.bf16.mxu0 0
    %117 = vmatpush1.bf16.xpose.msra.mxu0 %v89
    %118 = vmatprep.subr.bf16.mxu0 0
    %119 = vmatpush1.bf16.xpose.msra.mxu0 %v88
    %120 = vmatprep.subr.bf16.mxu0 0
    %121 = vmatpush2.bf16.xpose.msra.mxu0 0
    %122 = vmatprep.subr.bf16.mxu0 0
    %123 = vmatpush2.bf16.xpose.msra.mxu0 0
    %124 = vmatprep.subr.bf16.mxu0 0
    %125 = vmatpush2.bf16.xpose.msra.mxu0 0
    %126 = vmatprep.subr.bf16.mxu0 0
    %127 = vmatpush2.bf16.xpose.msra.mxu0 0
    %128 = vmatprep.subr.bf16.mxu0 0
    %129 = vmatpush2.bf16.xpose.msra.mxu0 0
    %130 = vmatprep.subr.bf16.mxu0 0
    %131 = vmatpush2.bf16.xpose.msra.mxu0 0
    %132 = vmatprep.subr.bf16.mxu0 0
    %133 = vmatpush2.bf16.xpose.msra.mxu0 0
    %134 = vmatprep.subr.bf16.mxu0 0
    %135 = vmatpush2.bf16.xpose.msra.mxu0 0
    %136 = vmatprep.mubr.bf16.mxu0 0
    %137 = vmatmul.mubr.bf16.gmra.mxu0 %v39
    %v138 = vpop.f32.mrf.mxu0
    %v139 = vadd.f32 0.0, %v138
    %v140 = vpop.f32.mrf.mxu0
    %v141 = vpop.f32.mrf.mxu0
    %v142 = vpop.f32.mrf.mxu0
    %143 = vdwg.mxu0
    %v144 = vmin.f32 %v139, 0.0
    %v145 = vand.u32 2147483647, %v139
    %v146 = vsub.f32 0.0, %v145
    %v147 = vmul.f32 %v146, 1.442695
    %v148 = vpow.pop %v147
    %v149 = vadd.f32 %v148, 1.0
    %v150 = vlog2.pop %v149
    %v151 = vmul.f32 %v150, 0.6931472
    %v152 = vmul.f32 -0.5, %v148
    %v153 = vadd.f32 %v152, 1.0
    %v154 = vmul.f32 %v153, %v148
    %v155 = vand.u32 2147483647, %v148
    %vm156 = vcmp.lt.f32.partialorder %v155, 0.0004427343
    %v157 = vsel %vm156, %v154, %v151
    %v158 = vsub.f32 %v144, %v157
    %159 = vst [vmem:[#allocation7] sm:$0xff] %v158
    // Predicated region
    $region18: #{tpu_custom_call.1} parent=1 // pred_check
      _
    $region19: #{tpu_custom_call.1} parent=1 // pred_check_branch
      %161 = sbr.rel (0) target = $region21
    $region20: #{tpu_custom_call.1} parent=1 // pred_region
      %s163 = ssub.s32 128, 128
      %164 = vsyncadd [#allocation4], %s163
      %s166 = sshll.u32 [#allocation7], 4
      %s167 = int_to_ptr.vmem [resolvable:$true] %s166
      %169 = dma.vmem_to_hbm [thread:$0]  %s167, 128, %s2, [#allocation4]
    $region21: #{tpu_custom_call.1} parent=1 // pred_fallthru
      _
    // Predicated region
    $region22: #{tpu_custom_call.1} parent=1 // pred_check
      _
    $region23: #{tpu_custom_call.1} parent=1 // pred_check_branch
      %171 = sbr.rel (0) target = $region25
    $region24: #{tpu_custom_call.1} parent=1 // pred_region
      %172 = dma.done [#allocation4], 128
    $region25: #{tpu_custom_call.1} parent=1 // pred_fallthru
      _
    %173 = vsyncpa [#allocation3], 1
    %174 = vsyncpa [#allocation6], 1
    %175 = vsyncpa [#allocation4], 1

</llo_original>
